<compile_context>
chip_gen: v5e
topology: v5e:2x2
jax: 0.10.0
libtpu: 0.0.40
codegen_flags: <defaults>
</compile_context>

<pallas_src>
import functools

import numpy as np
import jax
import jax.numpy as jnp
from jax import lax
from jax.experimental import pallas as pl
from jax.experimental.pallas import tpu as pltpu


def conv_layer_kernel(x_ref, w_ref, b_ref, rc_ref, o_ref, xs_ref, *,
                      H, W, S, k, spatial_pad, use_bias, use_norm, use_act):
    """One grid step = one batch block (n_img images flattened on the lane axis).

    x_ref : (Cin, N)        bf16  input, channels on sublanes, flat (image, pixel) on lanes
    w_ref : (Cout, k*k*Cin) bf16  tap-stacked weights (taps on the contraction axis)
    b_ref : (Cout, 1)       f32   conv bias (zeros when unused)
    rc_ref: (2, N)          i32   per-lane pixel row / col within its image (sentinel on pad lanes)
    o_ref : (Cout, N)             output block
    xs_ref: (k*k*Cin, N)    bf16  VMEM scratch: rolled + masked input taps, K-stacked
    """
    Cin, N = x_ref.shape
    r = k // 2

    rc = rc_ref[...]
    row = rc[0:1, :]                                  # (1, N) i32
    col = rc[1:2, :]                                  # (1, N) i32

    # Build the (k*k*Cin, N) stacked operand: one lane-rotated + boundary-masked copy of x per
    # tap.  The rolls run on the XLU (does not compete with the MXU); the masks are cheap VPU
    # selects built from the row/col planes (no HBM mask traffic).
    x32 = x_ref[...].astype(jnp.float32)              # (Cin, N)
    for t in range(k * k):
        dy, dx = t // k - r, t % k - r
        d = dy * W + dx                               # flat lane offset of the input neighbour
        # out[:, l] needs x[:, l + d]  ->  roll by -d (mod N) along the lane axis.
        tap = x32 if d == 0 else pltpu.roll(x32, shift=(-d) % N, axis=1)
        if (dy, dx) != (0, 0) or spatial_pad:
            valid = ((row + dy >= 0) & (row + dy < H) &
                     (col + dx >= 0) & (col + dx < W))
            tap = jnp.where(valid, tap, 0.0)
        xs_ref[pl.ds(t * Cin, Cin), :] = tap.astype(jnp.bfloat16)

    # Single MXU matmul, taps stacked on the contraction axis (bf16 operands, f32 accumulation).
    y = jnp.dot(w_ref[...], xs_ref[...], preferred_element_type=jnp.float32)   # (Cout, N) f32

    if use_bias:
        y = y + b_ref[...]                            # (Cout, 1) broadcast
    if use_norm:
        # InstanceNorm2d(affine=False, eps=1e-5): per-image / per-channel stats over H*W.
        # The wrapper keeps exactly one image per grid step when norm=True, so N covers one image.
        inv_s = 1.0 / float(S)
        mean = jnp.sum(y, axis=1, keepdims=True) * inv_s
        diff = y - mean
        if spatial_pad:
            diff = jnp.where(row < H, diff, 0.0)      # exclude lane padding from the stats
        var = jnp.sum(diff * diff, axis=1, keepdims=True) * inv_s
        y = (y - mean) * lax.rsqrt(var + 1e-5)
    if use_act:
        y = jnp.where(y > 0.0, y, 0.1 * y)            # LeakyReLU(0.1), f32 element-wise
    o_ref[...] = y.astype(o_ref.dtype)


@functools.partial(jax.jit, static_argnames=("activation", "norm", "out_dtype"))
def conv_layer_forward(x_nchw, w_hwio, bias=None, *, activation=True, norm=False,
                       out_dtype=jnp.float32):
    """ConvLayer.forward: Conv2d(k, stride=1, padding=k//2, bias=not norm)
    [-> InstanceNorm2d] [-> LeakyReLU(0.1)]."""
    B, Cin, H, W = x_nchw.shape
    k = w_hwio.shape[0]
    Cout = w_hwio.shape[-1]
    assert w_hwio.shape[:3] == (k, k, Cin) and k % 2 == 1
    # Only the ConvLayer defaults (stride=1, padding=k//2, zero padding) are implemented.
    S = H * W
    S_pad = ((S + 127) // 128) * 128                  # lane-align every image (128 lanes)
    spatial_pad = S_pad != S
    KK = k * k
    out_itemsize = jnp.dtype(out_dtype).itemsize

    # ---- batch-block size: amortize per-step overhead, stay inside VMEM (v7x: 64 MiB) ----
    per_image = S_pad * (2 * Cin * 2                  # x block, double-buffered bf16
                         + 2 * Cout * out_itemsize    # out block, double-buffered
                         + KK * Cin * 2               # K-stacked scratch
                         + Cout * 4                   # y (f32)
                         + 2 * Cin * 4                # f32 x copy + one rolled tap
                         + 4 * 4)                     # row/col/mask vectors
    if norm:
        bblk = 1                                      # InstanceNorm stats are per image
    else:
        bblk = max(1, min(B, (20 << 20) // max(per_image, 1)))
        bblk = min(bblk, max(1, (B + 1) // 2))        # keep >=2 grid steps for the 2nd v7x TC
    B_pad = ((B + bblk - 1) // bblk) * bblk
    G = B_pad // bblk
    N = bblk * S_pad

    # ---- host-side layout plumbing: channels on sublanes, flat (image, pixel) on lanes ----
    x_cs = x_nchw.reshape(B, Cin, S)
    if spatial_pad:
        x_cs = jnp.pad(x_cs, ((0, 0), (0, 0), (0, S_pad - S)))
    if B_pad != B:
        x_cs = jnp.pad(x_cs, ((0, B_pad - B), (0, 0), (0, 0)))
    x_cs = jnp.transpose(x_cs, (1, 0, 2)).reshape(Cin, B_pad * S_pad).astype(jnp.bfloat16)

    # Taps stacked on the contraction axis: w_mat[co, t*Cin + ci] = w_hwio[kh, kw, ci, co].
    w_mat = (w_hwio.reshape(KK, Cin, Cout).transpose(2, 0, 1)
             .reshape(Cout, KK * Cin).astype(jnp.bfloat16))
    use_bias = (bias is not None) and (not norm)
    b_col = (bias.reshape(Cout, 1).astype(jnp.float32) if use_bias
             else jnp.zeros((Cout, 1), jnp.float32))

    # Per-lane pixel row/col within its image (sentinel on lane-padding so every tap masks it).
    pos = np.arange(S_pad)
    sent = np.int32(1 << 20)
    row_np = np.where(pos < S, pos // W, sent).astype(np.int32)
    col_np = np.where(pos < S, pos % W, sent).astype(np.int32)
    rc_ids = jnp.asarray(np.stack([np.tile(row_np, bblk), np.tile(col_np, bblk)]))   # (2, N)

    kernel = functools.partial(conv_layer_kernel, H=H, W=W, S=S, k=k,
                               spatial_pad=spatial_pad, use_bias=use_bias,
                               use_norm=norm, use_act=activation)

    # VMEM budget from the actual blocks + scratch + f32 intermediates, with headroom,
    # capped well under v7x's 64 MiB physical VMEM.
    vmem_needed = (2 * Cin * N * 2                            # x (double-buffered)
                   + 2 * (Cout * KK * Cin * 2 + Cout * 4)     # weights + bias (double-buffered)
                   + 2 * 8 * N * 4                            # rc planes (padded to 8 sublanes)
                   + 2 * Cout * N * out_itemsize              # output (double-buffered)
                   + KK * Cin * N * 2                         # K-stacked scratch
                   + Cout * N * 4 + 2 * Cin * N * 4 + 4 * N * 4)   # f32 intermediates
    vmem_limit = int(min(48 << 20, max(16 << 20, vmem_needed + (8 << 20))))

    out = pl.pallas_call(
        kernel,
        out_shape=jax.ShapeDtypeStruct((Cout, B_pad * S_pad), out_dtype),
        grid_spec=pltpu.PrefetchScalarGridSpec(
            num_scalar_prefetch=0,
            grid=(G,),
            in_specs=[
                pl.BlockSpec((Cin, N), lambda i: (0, i)),            # x (one batch block)
                pl.BlockSpec((Cout, KK * Cin), lambda i: (0, 0)),    # K-stacked weights
                pl.BlockSpec((Cout, 1), lambda i: (0, 0)),           # bias
                pl.BlockSpec((2, N), lambda i: (0, 0)),              # row/col index planes
            ],
            out_specs=pl.BlockSpec((Cout, N), lambda i: (0, i)),
            scratch_shapes=[pltpu.VMEM((KK * Cin, N), jnp.bfloat16)],
        ),
        compiler_params=pltpu.CompilerParams(
            dimension_semantics=("parallel",),   # batch blocks are independent (2 TCs on v7x)
            vmem_limit_bytes=vmem_limit),
    )(x_cs, w_mat, b_col, rc_ids)

    out = out.reshape(Cout, B_pad, S_pad).transpose(1, 0, 2)[:B, :, :S]
    return out.reshape(B, Cout, H, W)


def reference_forward(x_nchw, w_hwio, bias=None, *, activation=True, norm=False):
    """Pure-JAX f32 reference with the PyTorch ConvLayer semantics."""
    x = jnp.transpose(x_nchw, (0, 2, 3, 1))                             # NHWC
    y = lax.conv_general_dilated(x, w_hwio, (1, 1), "SAME",
                                 dimension_numbers=("NHWC", "HWIO", "NHWC"))
    if (bias is not None) and (not norm):
        y = y + bias
    if norm:
        mean = y.mean(axis=(1, 2), keepdims=True)
        var = ((y - mean) ** 2).mean(axis=(1, 2), keepdims=True)
        y = (y - mean) * lax.rsqrt(var + 1e-5)
    if activation:
        y = jnp.where(y > 0.0, y, 0.1 * y)
    return jnp.transpose(y, (0, 3, 1, 2))


if __name__ == "__main__":
    Cin, Cout, H, W, K = 16, 32, 16, 16, 3
    key = jax.random.PRNGKey(0)
    kx, kx2, kw, kb = jax.random.split(key, 4)
    x = jax.random.normal(kx, (2, Cin, H, W), jnp.float32)
    x_big = jax.random.normal(kx2, (5, Cin, H, W), jnp.float32)          # exercises batch blocking
    w = jax.random.normal(kw, (K, K, Cin, Cout), jnp.float32) / np.sqrt(K * K * Cin)
    b = jax.random.normal(kb, (Cout,), jnp.float32) * 0.5

    # The two ConvLayer configurations the network uses, plus a batch-blocked run:
    #   1) defaults:  conv(+bias) -> LeakyReLU(0.1)
    #   2) norm=True: conv(no bias) -> InstanceNorm2d -> LeakyReLU(0.1)
    #   3) same as 1) with B=5 (multiple images per grid step + batch padding)
    cases = [
        (x, dict(bias=b, activation=True, norm=False)),
        (x, dict(bias=None, activation=True, norm=True)),
        (x_big, dict(bias=b, activation=True, norm=False)),
    ]
    for xin, cfg in cases:
        out = jax.block_until_ready(conv_layer_forward(xin, w, **cfg))
        ref = reference_forward(xin, w, **cfg)
        assert out.shape == (xin.shape[0], Cout, H, W)
        err = float(jnp.max(jnp.abs(out.astype(jnp.float32) - ref)))
        # Tolerance covers bf16 MXU operands (reference conv runs in f32).
        if not np.isfinite(err) or err > 5e-2:
            raise RuntimeError(f"mismatch vs reference (norm={cfg['norm']}, "
                               f"B={xin.shape[0]}): max abs err = {err}")
    print("KERNEL_OK")
</pallas_src>

<mosaic_0001>
module attributes {stable_mosaic.version = 11 : i64} {
  func.func @conv_layer_kernel(%arg0: i32, %arg1: memref<16x256xbf16, #tpu.memory_space<vmem>>, %arg2: memref<32x144xbf16, #tpu.memory_space<vmem>>, %arg3: memref<32x1xf32, #tpu.memory_space<vmem>>, %arg4: memref<2x256xi32, #tpu.memory_space<vmem>>, %arg5: memref<32x256xf32, #tpu.memory_space<vmem>>, %arg6: memref<144x256xbf16, #tpu.memory_space<vmem>>) attributes {dimension_semantics = [#tpu.dimension_semantics<parallel>], iteration_bounds = array<i64: 2>, scalar_prefetch = 0 : i64, scratch_operands = 1 : i64, tpu.core_type = #tpu.core_type<tc>, window_params = [{transform_indices = @transform_0, window_bounds = array<i64: 16, 256>}, {pipeline_mode = #tpu.pipeline_mode<synchronous>, transform_indices = @transform_1, window_bounds = array<i64: 32, 144>}, {pipeline_mode = #tpu.pipeline_mode<synchronous>, transform_indices = @transform_2, window_bounds = array<i64: 32, 1>}, {pipeline_mode = #tpu.pipeline_mode<synchronous>, transform_indices = @transform_3, window_bounds = array<i64: 2, 256>}, {transform_indices = @transform_4, window_bounds = array<i64: 32, 256>}]} {
    %c0 = arith.constant 0 : index
    %c0_0 = arith.constant 0 : index
    %0 = vector.load %arg4[%c0, %c0_0] : memref<2x256xi32, #tpu.memory_space<vmem>>, vector<2x256xi32>
    %1 = vector.extract_strided_slice %0 {offsets = [0, 0], sizes = [1, 256], strides = [1, 1]} : vector<2x256xi32> to vector<1x256xi32>
    %2 = vector.extract_strided_slice %0 {offsets = [1, 0], sizes = [1, 256], strides = [1, 1]} : vector<2x256xi32> to vector<1x256xi32>
    %c0_1 = arith.constant 0 : index
    %c0_2 = arith.constant 0 : index
    %3 = vector.load %arg1[%c0_1, %c0_2] : memref<16x256xbf16, #tpu.memory_space<vmem>>, vector<16x256xbf16>
    %4 = arith.extf %3 : vector<16x256xbf16> to vector<16x256xf32>
    %c17_i32 = arith.constant 17 : i32
    %5 = tpu.dynamic_rotate %4 by %c17_i32 dim 1 : vector<16x256xf32>, i32 -> vector<16x256xf32>
    %c-1_i32 = arith.constant -1 : i32
    %6 = vector.broadcast %c-1_i32 : i32 to vector<1x256xi32>
    %7 = arith.addi %1, %6 : vector<1x256xi32>
    %c0_i32 = arith.constant 0 : i32
    %8 = vector.broadcast %c0_i32 : i32 to vector<1x256xi32>
    %9 = arith.cmpi sge, %7, %8 : vector<1x256xi32>
    %c-1_i32_3 = arith.constant -1 : i32
    %10 = vector.broadcast %c-1_i32_3 : i32 to vector<1x256xi32>
    %11 = arith.addi %1, %10 : vector<1x256xi32>
    %c16_i32 = arith.constant 16 : i32
    %12 = vector.broadcast %c16_i32 : i32 to vector<1x256xi32>
    %13 = arith.cmpi slt, %11, %12 : vector<1x256xi32>
    %14 = arith.andi %9, %13 : vector<1x256xi1>
    %c-1_i32_4 = arith.constant -1 : i32
    %15 = vector.broadcast %c-1_i32_4 : i32 to vector<1x256xi32>
    %16 = arith.addi %2, %15 : vector<1x256xi32>
    %c0_i32_5 = arith.constant 0 : i32
    %17 = vector.broadcast %c0_i32_5 : i32 to vector<1x256xi32>
    %18 = arith.cmpi sge, %16, %17 : vector<1x256xi32>
    %19 = arith.andi %14, %18 : vector<1x256xi1>
    %c-1_i32_6 = arith.constant -1 : i32
    %20 = vector.broadcast %c-1_i32_6 : i32 to vector<1x256xi32>
    %21 = arith.addi %2, %20 : vector<1x256xi32>
    %c16_i32_7 = arith.constant 16 : i32
    %22 = vector.broadcast %c16_i32_7 : i32 to vector<1x256xi32>
    %23 = arith.cmpi slt, %21, %22 : vector<1x256xi32>
    %24 = arith.andi %19, %23 : vector<1x256xi1>
    %cst = arith.constant 0.000000e+00 : f32
    %25 = vector.shape_cast %24 : vector<1x256xi1> to vector<1x256xi1>
    %26 = vector.broadcast %25 : vector<1x256xi1> to vector<16x256xi1>
    %27 = vector.broadcast %cst : f32 to vector<16x256xf32>
    %28 = arith.select %26, %5, %27 : vector<16x256xi1>, vector<16x256xf32>
    %29 = arith.truncf %28 : vector<16x256xf32> to vector<16x256xbf16>
    %c0_8 = arith.constant 0 : index
    %c0_9 = arith.constant 0 : index
    %30 = vector.load %arg6[%c0_8, %c0_9] : memref<144x256xbf16, #tpu.memory_space<vmem>>, vector<16x256xbf16>
    tpu.vector_store %arg6[%c0_8, %c0_9], %29 {strides = array<i32>} : memref<144x256xbf16, #tpu.memory_space<vmem>>, vector<16x256xbf16>,
    %c16_i32_10 = arith.constant 16 : i32
    %31 = tpu.dynamic_rotate %4 by %c16_i32_10 dim 1 : vector<16x256xf32>, i32 -> vector<16x256xf32>
    %c-1_i32_11 = arith.constant -1 : i32
    %32 = vector.broadcast %c-1_i32_11 : i32 to vector<1x256xi32>
    %33 = arith.addi %1, %32 : vector<1x256xi32>
    %c0_i32_12 = arith.constant 0 : i32
    %34 = vector.broadcast %c0_i32_12 : i32 to vector<1x256xi32>
    %35 = arith.cmpi sge, %33, %34 : vector<1x256xi32>
    %c-1_i32_13 = arith.constant -1 : i32
    %36 = vector.broadcast %c-1_i32_13 : i32 to vector<1x256xi32>
    %37 = arith.addi %1, %36 : vector<1x256xi32>
    %c16_i32_14 = arith.constant 16 : i32
    %38 = vector.broadcast %c16_i32_14 : i32 to vector<1x256xi32>
    %39 = arith.cmpi slt, %37, %38 : vector<1x256xi32>
    %40 = arith.andi %35, %39 : vector<1x256xi1>
    %c0_i32_15 = arith.constant 0 : i32
    %41 = vector.broadcast %c0_i32_15 : i32 to vector<1x256xi32>
    %42 = arith.addi %2, %41 : vector<1x256xi32>
    %c0_i32_16 = arith.constant 0 : i32
    %43 = vector.broadcast %c0_i32_16 : i32 to vector<1x256xi32>
    %44 = arith.cmpi sge, %42, %43 : vector<1x256xi32>
    %45 = arith.andi %40, %44 : vector<1x256xi1>
    %c0_i32_17 = arith.constant 0 : i32
    %46 = vector.broadcast %c0_i32_17 : i32 to vector<1x256xi32>
    %47 = arith.addi %2, %46 : vector<1x256xi32>
    %c16_i32_18 = arith.constant 16 : i32
    %48 = vector.broadcast %c16_i32_18 : i32 to vector<1x256xi32>
    %49 = arith.cmpi slt, %47, %48 : vector<1x256xi32>
    %50 = arith.andi %45, %49 : vector<1x256xi1>
    %cst_19 = arith.constant 0.000000e+00 : f32
    %51 = vector.shape_cast %50 : vector<1x256xi1> to vector<1x256xi1>
    %52 = vector.broadcast %51 : vector<1x256xi1> to vector<16x256xi1>
    %53 = vector.broadcast %cst_19 : f32 to vector<16x256xf32>
    %54 = arith.select %52, %31, %53 : vector<16x256xi1>, vector<16x256xf32>
    %55 = arith.truncf %54 : vector<16x256xf32> to vector<16x256xbf16>
    %c16 = arith.constant 16 : index
    %c0_20 = arith.constant 0 : index
    %56 = vector.load %arg6[%c16, %c0_20] : memref<144x256xbf16, #tpu.memory_space<vmem>>, vector<16x256xbf16>
    tpu.vector_store %arg6[%c16, %c0_20], %55 {strides = array<i32>} : memref<144x256xbf16, #tpu.memory_space<vmem>>, vector<16x256xbf16>,
    %c15_i32 = arith.constant 15 : i32
    %57 = tpu.dynamic_rotate %4 by %c15_i32 dim 1 : vector<16x256xf32>, i32 -> vector<16x256xf32>
    %c-1_i32_21 = arith.constant -1 : i32
    %58 = vector.broadcast %c-1_i32_21 : i32 to vector<1x256xi32>
    %59 = arith.addi %1, %58 : vector<1x256xi32>
    %c0_i32_22 = arith.constant 0 : i32
    %60 = vector.broadcast %c0_i32_22 : i32 to vector<1x256xi32>
    %61 = arith.cmpi sge, %59, %60 : vector<1x256xi32>
    %c-1_i32_23 = arith.constant -1 : i32
    %62 = vector.broadcast %c-1_i32_23 : i32 to vector<1x256xi32>
    %63 = arith.addi %1, %62 : vector<1x256xi32>
    %c16_i32_24 = arith.constant 16 : i32
    %64 = vector.broadcast %c16_i32_24 : i32 to vector<1x256xi32>
    %65 = arith.cmpi slt, %63, %64 : vector<1x256xi32>
    %66 = arith.andi %61, %65 : vector<1x256xi1>
    %c1_i32 = arith.constant 1 : i32
    %67 = vector.broadcast %c1_i32 : i32 to vector<1x256xi32>
    %68 = arith.addi %2, %67 : vector<1x256xi32>
    %c0_i32_25 = arith.constant 0 : i32
    %69 = vector.broadcast %c0_i32_25 : i32 to vector<1x256xi32>
    %70 = arith.cmpi sge, %68, %69 : vector<1x256xi32>
    %71 = arith.andi %66, %70 : vector<1x256xi1>
    %c1_i32_26 = arith.constant 1 : i32
    %72 = vector.broadcast %c1_i32_26 : i32 to vector<1x256xi32>
    %73 = arith.addi %2, %72 : vector<1x256xi32>
    %c16_i32_27 = arith.constant 16 : i32
    %74 = vector.broadcast %c16_i32_27 : i32 to vector<1x256xi32>
    %75 = arith.cmpi slt, %73, %74 : vector<1x256xi32>
    %76 = arith.andi %71, %75 : vector<1x256xi1>
    %cst_28 = arith.constant 0.000000e+00 : f32
    %77 = vector.shape_cast %76 : vector<1x256xi1> to vector<1x256xi1>
    %78 = vector.broadcast %77 : vector<1x256xi1> to vector<16x256xi1>
    %79 = vector.broadcast %cst_28 : f32 to vector<16x256xf32>
    %80 = arith.select %78, %57, %79 : vector<16x256xi1>, vector<16x256xf32>
    %81 = arith.truncf %80 : vector<16x256xf32> to vector<16x256xbf16>
    %c32 = arith.constant 32 : index
    %c0_29 = arith.constant 0 : index
    %82 = vector.load %arg6[%c32, %c0_29] : memref<144x256xbf16, #tpu.memory_space<vmem>>, vector<16x256xbf16>
    tpu.vector_store %arg6[%c32, %c0_29], %81 {strides = array<i32>} : memref<144x256xbf16, #tpu.memory_space<vmem>>, vector<16x256xbf16>,
    %c1_i32_30 = arith.constant 1 : i32
    %83 = tpu.dynamic_rotate %4 by %c1_i32_30 dim 1 : vector<16x256xf32>, i32 -> vector<16x256xf32>
    %c0_i32_31 = arith.constant 0 : i32
    %84 = vector.broadcast %c0_i32_31 : i32 to vector<1x256xi32>
    %85 = arith.addi %1, %84 : vector<1x256xi32>
    %c0_i32_32 = arith.constant 0 : i32
    %86 = vector.broadcast %c0_i32_32 : i32 to vector<1x256xi32>
    %87 = arith.cmpi sge, %85, %86 : vector<1x256xi32>
    %c0_i32_33 = arith.constant 0 : i32
    %88 = vector.broadcast %c0_i32_33 : i32 to vector<1x256xi32>
    %89 = arith.addi %1, %88 : vector<1x256xi32>
    %c16_i32_34 = arith.constant 16 : i32
    %90 = vector.broadcast %c16_i32_34 : i32 to vector<1x256xi32>
    %91 = arith.cmpi slt, %89, %90 : vector<1x256xi32>
    %92 = arith.andi %87, %91 : vector<1x256xi1>
    %c-1_i32_35 = arith.constant -1 : i32
    %93 = vector.broadcast %c-1_i32_35 : i32 to vector<1x256xi32>
    %94 = arith.addi %2, %93 : vector<1x256xi32>
    %c0_i32_36 = arith.constant 0 : i32
    %95 = vector.broadcast %c0_i32_36 : i32 to vector<1x256xi32>
    %96 = arith.cmpi sge, %94, %95 : vector<1x256xi32>
    %97 = arith.andi %92, %96 : vector<1x256xi1>
    %c-1_i32_37 = arith.constant -1 : i32
    %98 = vector.broadcast %c-1_i32_37 : i32 to vector<1x256xi32>
    %99 = arith.addi %2, %98 : vector<1x256xi32>
    %c16_i32_38 = arith.constant 16 : i32
    %100 = vector.broadcast %c16_i32_38 : i32 to vector<1x256xi32>
    %101 = arith.cmpi slt, %99, %100 : vector<1x256xi32>
    %102 = arith.andi %97, %101 : vector<1x256xi1>
    %cst_39 = arith.constant 0.000000e+00 : f32
    %103 = vector.shape_cast %102 : vector<1x256xi1> to vector<1x256xi1>
    %104 = vector.broadcast %103 : vector<1x256xi1> to vector<16x256xi1>
    %105 = vector.broadcast %cst_39 : f32 to vector<16x256xf32>
    %106 = arith.select %104, %83, %105 : vector<16x256xi1>, vector<16x256xf32>
    %107 = arith.truncf %106 : vector<16x256xf32> to vector<16x256xbf16>
    %c48 = arith.constant 48 : index
    %c0_40 = arith.constant 0 : index
    %108 = vector.load %arg6[%c48, %c0_40] : memref<144x256xbf16, #tpu.memory_space<vmem>>, vector<16x256xbf16>
    tpu.vector_store %arg6[%c48, %c0_40], %107 {strides = array<i32>} : memref<144x256xbf16, #tpu.memory_space<vmem>>, vector<16x256xbf16>,
    %109 = arith.truncf %4 : vector<16x256xf32> to vector<16x256xbf16>
    %c64 = arith.constant 64 : index
    %c0_41 = arith.constant 0 : index
    %110 = vector.load %arg6[%c64, %c0_41] : memref<144x256xbf16, #tpu.memory_space<vmem>>, vector<16x256xbf16>
    tpu.vector_store %arg6[%c64, %c0_41], %109 {strides = array<i32>} : memref<144x256xbf16, #tpu.memory_space<vmem>>, vector<16x256xbf16>,
    %c255_i32 = arith.constant 255 : i32
    %111 = tpu.dynamic_rotate %4 by %c255_i32 dim 1 : vector<16x256xf32>, i32 -> vector<16x256xf32>
    %c0_i32_42 = arith.constant 0 : i32
    %112 = vector.broadcast %c0_i32_42 : i32 to vector<1x256xi32>
    %113 = arith.addi %1, %112 : vector<1x256xi32>
    %c0_i32_43 = arith.constant 0 : i32
    %114 = vector.broadcast %c0_i32_43 : i32 to vector<1x256xi32>
    %115 = arith.cmpi sge, %113, %114 : vector<1x256xi32>
    %c0_i32_44 = arith.constant 0 : i32
    %116 = vector.broadcast %c0_i32_44 : i32 to vector<1x256xi32>
    %117 = arith.addi %1, %116 : vector<1x256xi32>
    %c16_i32_45 = arith.constant 16 : i32
    %118 = vector.broadcast %c16_i32_45 : i32 to vector<1x256xi32>
    %119 = arith.cmpi slt, %117, %118 : vector<1x256xi32>
    %120 = arith.andi %115, %119 : vector<1x256xi1>
    %c1_i32_46 = arith.constant 1 : i32
    %121 = vector.broadcast %c1_i32_46 : i32 to vector<1x256xi32>
    %122 = arith.addi %2, %121 : vector<1x256xi32>
    %c0_i32_47 = arith.constant 0 : i32
    %123 = vector.broadcast %c0_i32_47 : i32 to vector<1x256xi32>
    %124 = arith.cmpi sge, %122, %123 : vector<1x256xi32>
    %125 = arith.andi %120, %124 : vector<1x256xi1>
    %c1_i32_48 = arith.constant 1 : i32
    %126 = vector.broadcast %c1_i32_48 : i32 to vector<1x256xi32>
    %127 = arith.addi %2, %126 : vector<1x256xi32>
    %c16_i32_49 = arith.constant 16 : i32
    %128 = vector.broadcast %c16_i32_49 : i32 to vector<1x256xi32>
    %129 = arith.cmpi slt, %127, %128 : vector<1x256xi32>
    %130 = arith.andi %125, %129 : vector<1x256xi1>
    %cst_50 = arith.constant 0.000000e+00 : f32
    %131 = vector.shape_cast %130 : vector<1x256xi1> to vector<1x256xi1>
    %132 = vector.broadcast %131 : vector<1x256xi1> to vector<16x256xi1>
    %133 = vector.broadcast %cst_50 : f32 to vector<16x256xf32>
    %134 = arith.select %132, %111, %133 : vector<16x256xi1>, vector<16x256xf32>
    %135 = arith.truncf %134 : vector<16x256xf32> to vector<16x256xbf16>
    %c80 = arith.constant 80 : index
    %c0_51 = arith.constant 0 : index
    %136 = vector.load %arg6[%c80, %c0_51] : memref<144x256xbf16, #tpu.memory_space<vmem>>, vector<16x256xbf16>
    tpu.vector_store %arg6[%c80, %c0_51], %135 {strides = array<i32>} : memref<144x256xbf16, #tpu.memory_space<vmem>>, vector<16x256xbf16>,
    %c241_i32 = arith.constant 241 : i32
    %137 = tpu.dynamic_rotate %4 by %c241_i32 dim 1 : vector<16x256xf32>, i32 -> vector<16x256xf32>
    %c1_i32_52 = arith.constant 1 : i32
    %138 = vector.broadcast %c1_i32_52 : i32 to vector<1x256xi32>
    %139 = arith.addi %1, %138 : vector<1x256xi32>
    %c0_i32_53 = arith.constant 0 : i32
    %140 = vector.broadcast %c0_i32_53 : i32 to vector<1x256xi32>
    %141 = arith.cmpi sge, %139, %140 : vector<1x256xi32>
    %c1_i32_54 = arith.constant 1 : i32
    %142 = vector.broadcast %c1_i32_54 : i32 to vector<1x256xi32>
    %143 = arith.addi %1, %142 : vector<1x256xi32>
    %c16_i32_55 = arith.constant 16 : i32
    %144 = vector.broadcast %c16_i32_55 : i32 to vector<1x256xi32>
    %145 = arith.cmpi slt, %143, %144 : vector<1x256xi32>
    %146 = arith.andi %141, %145 : vector<1x256xi1>
    %c-1_i32_56 = arith.constant -1 : i32
    %147 = vector.broadcast %c-1_i32_56 : i32 to vector<1x256xi32>
    %148 = arith.addi %2, %147 : vector<1x256xi32>
    %c0_i32_57 = arith.constant 0 : i32
    %149 = vector.broadcast %c0_i32_57 : i32 to vector<1x256xi32>
    %150 = arith.cmpi sge, %148, %149 : vector<1x256xi32>
    %151 = arith.andi %146, %150 : vector<1x256xi1>
    %c-1_i32_58 = arith.constant -1 : i32
    %152 = vector.broadcast %c-1_i32_58 : i32 to vector<1x256xi32>
    %153 = arith.addi %2, %152 : vector<1x256xi32>
    %c16_i32_59 = arith.constant 16 : i32
    %154 = vector.broadcast %c16_i32_59 : i32 to vector<1x256xi32>
    %155 = arith.cmpi slt, %153, %154 : vector<1x256xi32>
    %156 = arith.andi %151, %155 : vector<1x256xi1>
    %cst_60 = arith.constant 0.000000e+00 : f32
    %157 = vector.shape_cast %156 : vector<1x256xi1> to vector<1x256xi1>
    %158 = vector.broadcast %157 : vector<1x256xi1> to vector<16x256xi1>
    %159 = vector.broadcast %cst_60 : f32 to vector<16x256xf32>
    %160 = arith.select %158, %137, %159 : vector<16x256xi1>, vector<16x256xf32>
    %161 = arith.truncf %160 : vector<16x256xf32> to vector<16x256xbf16>
    %c96 = arith.constant 96 : index
    %c0_61 = arith.constant 0 : index
    %162 = vector.load %arg6[%c96, %c0_61] : memref<144x256xbf16, #tpu.memory_space<vmem>>, vector<16x256xbf16>
    tpu.vector_store %arg6[%c96, %c0_61], %161 {strides = array<i32>} : memref<144x256xbf16, #tpu.memory_space<vmem>>, vector<16x256xbf16>,
    %c240_i32 = arith.constant 240 : i32
    %163 = tpu.dynamic_rotate %4 by %c240_i32 dim 1 : vector<16x256xf32>, i32 -> vector<16x256xf32>
    %c1_i32_62 = arith.constant 1 : i32
    %164 = vector.broadcast %c1_i32_62 : i32 to vector<1x256xi32>
    %165 = arith.addi %1, %164 : vector<1x256xi32>
    %c0_i32_63 = arith.constant 0 : i32
    %166 = vector.broadcast %c0_i32_63 : i32 to vector<1x256xi32>
    %167 = arith.cmpi sge, %165, %166 : vector<1x256xi32>
    %c1_i32_64 = arith.constant 1 : i32
    %168 = vector.broadcast %c1_i32_64 : i32 to vector<1x256xi32>
    %169 = arith.addi %1, %168 : vector<1x256xi32>
    %c16_i32_65 = arith.constant 16 : i32
    %170 = vector.broadcast %c16_i32_65 : i32 to vector<1x256xi32>
    %171 = arith.cmpi slt, %169, %170 : vector<1x256xi32>
    %172 = arith.andi %167, %171 : vector<1x256xi1>
    %c0_i32_66 = arith.constant 0 : i32
    %173 = vector.broadcast %c0_i32_66 : i32 to vector<1x256xi32>
    %174 = arith.addi %2, %173 : vector<1x256xi32>
    %c0_i32_67 = arith.constant 0 : i32
    %175 = vector.broadcast %c0_i32_67 : i32 to vector<1x256xi32>
    %176 = arith.cmpi sge, %174, %175 : vector<1x256xi32>
    %177 = arith.andi %172, %176 : vector<1x256xi1>
    %c0_i32_68 = arith.constant 0 : i32
    %178 = vector.broadcast %c0_i32_68 : i32 to vector<1x256xi32>
    %179 = arith.addi %2, %178 : vector<1x256xi32>
    %c16_i32_69 = arith.constant 16 : i32
    %180 = vector.broadcast %c16_i32_69 : i32 to vector<1x256xi32>
    %181 = arith.cmpi slt, %179, %180 : vector<1x256xi32>
    %182 = arith.andi %177, %181 : vector<1x256xi1>
    %cst_70 = arith.constant 0.000000e+00 : f32
    %183 = vector.shape_cast %182 : vector<1x256xi1> to vector<1x256xi1>
    %184 = vector.broadcast %183 : vector<1x256xi1> to vector<16x256xi1>
    %185 = vector.broadcast %cst_70 : f32 to vector<16x256xf32>
    %186 = arith.select %184, %163, %185 : vector<16x256xi1>, vector<16x256xf32>
    %187 = arith.truncf %186 : vector<16x256xf32> to vector<16x256xbf16>
    %c112 = arith.constant 112 : index
    %c0_71 = arith.constant 0 : index
    %188 = vector.load %arg6[%c112, %c0_71] : memref<144x256xbf16, #tpu.memory_space<vmem>>, vector<16x256xbf16>
    tpu.vector_store %arg6[%c112, %c0_71], %187 {strides = array<i32>} : memref<144x256xbf16, #tpu.memory_space<vmem>>, vector<16x256xbf16>,
    %c239_i32 = arith.constant 239 : i32
    %189 = tpu.dynamic_rotate %4 by %c239_i32 dim 1 : vector<16x256xf32>, i32 -> vector<16x256xf32>
    %c1_i32_72 = arith.constant 1 : i32
    %190 = vector.broadcast %c1_i32_72 : i32 to vector<1x256xi32>
    %191 = arith.addi %1, %190 : vector<1x256xi32>
    %c0_i32_73 = arith.constant 0 : i32
    %192 = vector.broadcast %c0_i32_73 : i32 to vector<1x256xi32>
    %193 = arith.cmpi sge, %191, %192 : vector<1x256xi32>
    %c1_i32_74 = arith.constant 1 : i32
    %194 = vector.broadcast %c1_i32_74 : i32 to vector<1x256xi32>
    %195 = arith.addi %1, %194 : vector<1x256xi32>
    %c16_i32_75 = arith.constant 16 : i32
    %196 = vector.broadcast %c16_i32_75 : i32 to vector<1x256xi32>
    %197 = arith.cmpi slt, %195, %196 : vector<1x256xi32>
    %198 = arith.andi %193, %197 : vector<1x256xi1>
    %c1_i32_76 = arith.constant 1 : i32
    %199 = vector.broadcast %c1_i32_76 : i32 to vector<1x256xi32>
    %200 = arith.addi %2, %199 : vector<1x256xi32>
    %c0_i32_77 = arith.constant 0 : i32
    %201 = vector.broadcast %c0_i32_77 : i32 to vector<1x256xi32>
    %202 = arith.cmpi sge, %200, %201 : vector<1x256xi32>
    %203 = arith.andi %198, %202 : vector<1x256xi1>
    %c1_i32_78 = arith.constant 1 : i32
    %204 = vector.broadcast %c1_i32_78 : i32 to vector<1x256xi32>
    %205 = arith.addi %2, %204 : vector<1x256xi32>
    %c16_i32_79 = arith.constant 16 : i32
    %206 = vector.broadcast %c16_i32_79 : i32 to vector<1x256xi32>
    %207 = arith.cmpi slt, %205, %206 : vector<1x256xi32>
    %208 = arith.andi %203, %207 : vector<1x256xi1>
    %cst_80 = arith.constant 0.000000e+00 : f32
    %209 = vector.shape_cast %208 : vector<1x256xi1> to vector<1x256xi1>
    %210 = vector.broadcast %209 : vector<1x256xi1> to vector<16x256xi1>
    %211 = vector.broadcast %cst_80 : f32 to vector<16x256xf32>
    %212 = arith.select %210, %189, %211 : vector<16x256xi1>, vector<16x256xf32>
    %213 = arith.truncf %212 : vector<16x256xf32> to vector<16x256xbf16>
    %c128 = arith.constant 128 : index
    %c0_81 = arith.constant 0 : index
    %214 = vector.load %arg6[%c128, %c0_81] : memref<144x256xbf16, #tpu.memory_space<vmem>>, vector<16x256xbf16>
    tpu.vector_store %arg6[%c128, %c0_81], %213 {strides = array<i32>} : memref<144x256xbf16, #tpu.memory_space<vmem>>, vector<16x256xbf16>,
    %c0_82 = arith.constant 0 : index
    %c0_83 = arith.constant 0 : index
    %215 = vector.load %arg2[%c0_82, %c0_83] : memref<32x144xbf16, #tpu.memory_space<vmem>>, vector<32x144xbf16>
    %c0_84 = arith.constant 0 : index
    %c0_85 = arith.constant 0 : index
    %216 = vector.load %arg6[%c0_84, %c0_85] : memref<144x256xbf16, #tpu.memory_space<vmem>>, vector<144x256xbf16>
    %cst_86 = arith.constant dense<0.000000e+00> : vector<32x256xf32>
    %217 = tpu.matmul %215, %216, %cst_86 {dimension_numbers = #tpu.dot_dimension_numbers<[1], [0], [0], [1], [0, 0, 1, 1], [], []>} : vector<32x144xbf16>, vector<144x256xbf16>, vector<32x256xf32> -> vector<32x256xf32>
    %c0_87 = arith.constant 0 : index
    %c0_88 = arith.constant 0 : index
    %218 = vector.load %arg3[%c0_87, %c0_88] : memref<32x1xf32, #tpu.memory_space<vmem>>, vector<32x1xf32>
    %219 = vector.broadcast %218 : vector<32x1xf32> to vector<32x256xf32>
    %220 = arith.addf %217, %219 : vector<32x256xf32>
    %cst_89 = arith.constant 0.000000e+00 : f32
    %221 = vector.broadcast %cst_89 : f32 to vector<32x256xf32>
    %222 = arith.cmpf ogt, %220, %221 : vector<32x256xf32>
    %cst_90 = arith.constant 1.000000e-01 : f32
    %223 = vector.broadcast %cst_90 : f32 to vector<32x256xf32>
    %224 = arith.mulf %223, %220 : vector<32x256xf32>
    %225 = arith.select %222, %220, %224 : vector<32x256xi1>, vector<32x256xf32>
    %c0_91 = arith.constant 0 : index
    %c0_92 = arith.constant 0 : index
    %226 = vector.load %arg5[%c0_91, %c0_92] : memref<32x256xf32, #tpu.memory_space<vmem>>, vector<32x256xf32>
    tpu.vector_store %arg5[%c0_91, %c0_92], %225 {strides = array<i32>} : memref<32x256xf32, #tpu.memory_space<vmem>>, vector<32x256xf32>,
    return
  }
  func.func @transform_0(%arg0: i32) -> (i32, i32) {
    %c0_i32 = arith.constant 0 : i32
    %c0_i32_0 = arith.constant 0 : i32
    return %c0_i32, %arg0 : i32, i32
  }
  func.func @transform_1(%arg0: i32) -> (i32, i32) {
    %c0_i32 = arith.constant 0 : i32
    %c0_i32_0 = arith.constant 0 : i32
    %c0_i32_1 = arith.constant 0 : i32
    return %c0_i32, %c0_i32_0 : i32, i32
  }
  func.func @transform_2(%arg0: i32) -> (i32, i32) {
    %c0_i32 = arith.constant 0 : i32
    %c0_i32_0 = arith.constant 0 : i32
    %c0_i32_1 = arith.constant 0 : i32
    return %c0_i32, %c0_i32_0 : i32, i32
  }
  func.func @transform_3(%arg0: i32) -> (i32, i32) {
    %c0_i32 = arith.constant 0 : i32
    %c0_i32_0 = arith.constant 0 : i32
    %c0_i32_1 = arith.constant 0 : i32
    return %c0_i32, %c0_i32_0 : i32, i32
  }
  func.func @transform_4(%arg0: i32) -> (i32, i32) {
    %c0_i32 = arith.constant 0 : i32
    %c0_i32_0 = arith.constant 0 : i32
    return %c0_i32, %arg0 : i32, i32
  }
}

</mosaic_0001>

<llo_original>
// kernel: conv_layer_forward.1
$region0: #{conv_layer_forward.1}
  #allocation0 [shape = 'u32[]', space=smem, size = 0x4, offset = 0x4, fixed_abs, tag = 'smem constant byte address 0x4 - core index']
  #allocation1 [shape = 'u32[72,128]{1,0:T(1,128)}', space=vmem, size = 0x9000, scoped, tag = 'internal scratch']
  #allocation2 [shape = 'bf16[144,256]{1,0:T(8,128)(2,1)}', space=vmem, size = 0x12000, scoped, tag = 'scratch operand']
  %s0 = inlined_call_operand.vmem [shape: bf16[16,512], index: 0, kind: input, shape index: {}]
  %s1 = inlined_call_operand.vmem [shape: bf16[32,144], index: 1, kind: input, shape index: {}]
  %s2 = inlined_call_operand.vmem [shape: f32[32,1], index: 2, kind: input, shape index: {}]
  %s3 = inlined_call_operand.vmem [shape: s32[2,256], index: 3, kind: input, shape index: {}]
  %s4 = inlined_call_operand.vmem [shape: f32[32,512], index: 4, kind: output, shape index: {}]
  %s5 = sld [smem:[#allocation0]]
  $region106: #{conv_layer_forward.1} parent=0
    _
  %s7 = ssub.s32 1, %s5
  %s8 = scalar_select 0, %s7, %s5
  $region1: #{conv_layer_forward.1} parent=0
    #allocation3 [shape = 'u8[16384]{0}', space=vmem, size = 0x4000, scoped, tag = 'input window, operand 0']
    #allocation4 [shape = 'u8[65536]{0}', space=vmem, size = 0x10000, scoped, tag = 'output window, operand 0']
    loop: start=0, step=1, limit=4
    $region2: #{conv_layer_forward.1} parent=1 // loop_pre_header
      _
    $region3: #{conv_layer_forward.1} parent=1 // loop_header
      %s10 = sphi 0, %s14
      %p11 = scmp.ge.s32.totalorder %s10, 4
      %s20 = sphi 0, %s22
      %s23 = sphi 0, %s20
      %s24 = sphi 0, %s23
      %s40 = sphi 0, %s24
      %s44 = sphi 0, %s44
      %s46 = sphi 0, %s44
      %s47 = sphi 0, %s46
      %s61 = sphi 0, %s47
      %s65 = sphi 0, %s65
      %s67 = sphi 0, %s65
      %s68 = sphi 0, %s67
      %s82 = sphi 0, %s68
      %s86 = sphi 0, %s86
      %s88 = sphi 0, %s86
      %s89 = sphi 0, %s88
      %s103 = sphi 0, %s89
      %s109 = sphi 0, %s111
      %s112 = sphi 0, %s109
      %s113 = sphi 0, %s112
      %s129 = sphi 0, %s113
    $region4: #{conv_layer_forward.1} parent=1 // loop_header_branch
      %13 = sbr.rel (%p11) target = $region8
    $region5: #{conv_layer_forward.1} parent=1 // loop_body
      %s15 = ssub.s32 %s10, 1
      %s16 = ssub.s32 %s10, 2
      %s17 = sadd.s32 %s10, 1
      %s18 = ssub.s32 %s10, %s17
      %p19 = scmp.eq.s32.totalorder %s18, 0
      %s21 = sadd.s32 %s20, 1
      %s22 = scalar_select %p19, %s20, %s21
      %p25 = pneg %p19
      %p26 = scmp.eq.s32.totalorder %s10, 1
      %p27 = por %p25, %p26
      %p28 = scmp.ne.s32.totalorder %s20, %s23
      %p29 = scmp.eq.s32.totalorder %s10, 0
      %p30 = por %p28, %p29
      %p31 = scmp.ne.s32.totalorder %s20, %s23
      %p32 = scmp.eq.s32.totalorder %s15, 1
      %p33 = por %p31, %p32
      %p34 = scmp.ne.s32.totalorder %s23, %s24
      %p35 = scmp.eq.s32.totalorder %s15, 0
      %p36 = por %p34, %p35
      %p37 = scmp.ne.s32.totalorder %s23, %s24
      %p38 = scmp.eq.s32.totalorder %s16, 1
      %p39 = por %p37, %p38
      %p41 = scmp.ne.s32.totalorder %s24, %s40
      %p42 = scmp.eq.s32.totalorder %s16, 0
      %p43 = por %p41, %p42
      %s45 = sadd.s32 %s44, 1
      %p48 = scmp.eq.s32.totalorder %s10, 1
      %p49 = scmp.ne.s32.totalorder %s44, %s46
      %p50 = scmp.eq.s32.totalorder %s10, 0
      %p51 = por %p49, %p50
      %p52 = scmp.ne.s32.totalorder %s44, %s46
      %p53 = scmp.eq.s32.totalorder %s15, 1
      %p54 = por %p52, %p53
      %p55 = scmp.ne.s32.totalorder %s46, %s47
      %p56 = scmp.eq.s32.totalorder %s15, 0
      %p57 = por %p55, %p56
      %p58 = scmp.ne.s32.totalorder %s46, %s47
      %p59 = scmp.eq.s32.totalorder %s16, 1
      %p60 = por %p58, %p59
      %p62 = scmp.ne.s32.totalorder %s47, %s61
      %p63 = scmp.eq.s32.totalorder %s16, 0
      %p64 = por %p62, %p63
      %s66 = sadd.s32 %s65, 1
      %p69 = scmp.eq.s32.totalorder %s10, 1
      %p70 = scmp.ne.s32.totalorder %s65, %s67
      %p71 = scmp.eq.s32.totalorder %s10, 0
      %p72 = por %p70, %p71
      %p73 = scmp.ne.s32.totalorder %s65, %s67
      %p74 = scmp.eq.s32.totalorder %s15, 1
      %p75 = por %p73, %p74
      %p76 = scmp.ne.s32.totalorder %s67, %s68
      %p77 = scmp.eq.s32.totalorder %s15, 0
      %p78 = por %p76, %p77
      %p79 = scmp.ne.s32.totalorder %s67, %s68
      %p80 = scmp.eq.s32.totalorder %s16, 1
      %p81 = por %p79, %p80
      %p83 = scmp.ne.s32.totalorder %s68, %s82
      %p84 = scmp.eq.s32.totalorder %s16, 0
      %p85 = por %p83, %p84
      %s87 = sadd.s32 %s86, 1
      %p90 = scmp.eq.s32.totalorder %s10, 1
      %p91 = scmp.ne.s32.totalorder %s86, %s88
      %p92 = scmp.eq.s32.totalorder %s10, 0
      %p93 = por %p91, %p92
      %p94 = scmp.ne.s32.totalorder %s86, %s88
      %p95 = scmp.eq.s32.totalorder %s15, 1
      %p96 = por %p94, %p95
      %p97 = scmp.ne.s32.totalorder %s88, %s89
      %p98 = scmp.eq.s32.totalorder %s15, 0
      %p99 = por %p97, %p98
      %p100 = scmp.ne.s32.totalorder %s88, %s89
      %p101 = scmp.eq.s32.totalorder %s16, 1
      %p102 = por %p100, %p101
      %p104 = scmp.ne.s32.totalorder %s89, %s103
      %p105 = scmp.eq.s32.totalorder %s16, 0
      %p106 = por %p104, %p105
      %s107 = ssub.s32 %s10, %s17
      %p108 = scmp.eq.s32.totalorder %s107, 0
      %s110 = sadd.s32 %s109, 1
      %s111 = scalar_select %p108, %s109, %s110
      %p114 = pneg %p108
      %p115 = scmp.eq.s32.totalorder %s10, 1
      %p116 = por %p114, %p115
      %p117 = scmp.ne.s32.totalorder %s109, %s112
      %p118 = scmp.eq.s32.totalorder %s10, 0
      %p119 = por %p117, %p118
      %p120 = scmp.ne.s32.totalorder %s109, %s112
      %p121 = scmp.eq.s32.totalorder %s15, 1
      %p122 = por %p120, %p121
      %p123 = scmp.ne.s32.totalorder %s112, %s113
      %p124 = scmp.eq.s32.totalorder %s15, 0
      %p125 = por %p123, %p124
      %p126 = scmp.ne.s32.totalorder %s112, %s113
      %p127 = scmp.eq.s32.totalorder %s16, 1
      %p128 = por %p126, %p127
      %p130 = scmp.ne.s32.totalorder %s113, %s129
      %p131 = scmp.eq.s32.totalorder %s16, 0
      %p132 = por %p130, %p131
      %p133 = scmp.le.s32.totalorder 1, %s10
      %p134 = scmp.lt.s32.totalorder %s10, 3
      %p135 = pnand %p133, %p134
      %p136 = pneg %p135
      // Predicated region
      $region9: #{conv_layer_forward.1} parent=5 // pred_check
        _
      $region10: #{conv_layer_forward.1} parent=5 // pred_check_branch
        %138 = sbr.rel (%p135) target = $region12
      $region11: #{conv_layer_forward.1} parent=5 // pred_region
        %s139 = ssub.s32 %s10, 1
        // Predicated region
        $region13: #{conv_layer_forward.1} parent=11 // pred_check
          %p140 = pneg %p57
        $region14: #{conv_layer_forward.1} parent=11 // pred_check_branch
          %142 = sbr.rel (%p140) target = $region16
        $region15: #{conv_layer_forward.1} parent=11 // pred_region
          _
        $region16: #{conv_layer_forward.1} parent=11 // pred_fallthru
          _
        // Predicated region
        $region17: #{conv_layer_forward.1} parent=11 // pred_check
          %p143 = pneg %p78
        $region18: #{conv_layer_forward.1} parent=11 // pred_check_branch
          %145 = sbr.rel (%p143) target = $region20
        $region19: #{conv_layer_forward.1} parent=11 // pred_region
          _
        $region20: #{conv_layer_forward.1} parent=11 // pred_fallthru
          _
        // Predicated region
        $region21: #{conv_layer_forward.1} parent=11 // pred_check
          %p146 = pneg %p99
        $region22: #{conv_layer_forward.1} parent=11 // pred_check_branch
          %148 = sbr.rel (%p146) target = $region24
        $region23: #{conv_layer_forward.1} parent=11 // pred_region
          _
        $region24: #{conv_layer_forward.1} parent=11 // pred_fallthru
          _
      $region12: #{conv_layer_forward.1} parent=5 // pred_fallthru
        _
      %p149 = scmp.lt.s32.totalorder %s10, 2
      // Predicated region
      $region25: #{conv_layer_forward.1} parent=5 // pred_check
        %p150 = pneg %p149
      $region26: #{conv_layer_forward.1} parent=5 // pred_check_branch
        %152 = sbr.rel (%p150) target = $region28
      $region27: #{conv_layer_forward.1} parent=5 // pred_region
        // Predicated region
        $region29: #{conv_layer_forward.1} parent=27 // pred_check
          %p153 = pneg %p30
        $region30: #{conv_layer_forward.1} parent=27 // pred_check_branch
          %155 = sbr.rel (%p153) target = $region32
        $region31: #{conv_layer_forward.1} parent=27 // pred_region
          %s156 = sand.u32 %s20, 1
          %s157 = sand.u32 %s20, 1
          %s158 = smul.addr %s157, 16
          %s159 = scalar_lea.vmem [#allocation3], %s158
          %s160 = smul.u32 2, %s10
          %s161 = smul.addr %s160, 4
          %s162 = scalar_lea.vmem %s0, %s161
          // Predicated region
          $region33: #{conv_layer_forward.1} parent=31 // pred_check
            _
          $region34: #{conv_layer_forward.1} parent=31 // pred_check_branch
            %164 = sbr.rel (0) target = $region36
          $region35: #{conv_layer_forward.1} parent=31 // pred_region
            // Predicated region
            $region37: #{conv_layer_forward.1} parent=35 // pred_check
              _
            $region38: #{conv_layer_forward.1} parent=35 // pred_check_branch
              %166 = sbr.rel (0) target = $region40
            $region39: #{conv_layer_forward.1} parent=35 // pred_region
              // Predicated region
              $region52: #{conv_layer_forward.1} parent=39 // pred_check
                _
              $region53: #{conv_layer_forward.1} parent=39 // pred_check_branch
                %184 = sbr.rel (0) target = $region55
              $region54: #{conv_layer_forward.1} parent=39 // pred_region
                loop: start=0, step=1, limit=1
                $region56: #{conv_layer_forward.1} parent=54 // loop_pre_header
                  _
                $region57: #{conv_layer_forward.1} parent=54 // loop_header
                  %s186 = sphi 0, %s190
                  %p187 = scmp.ge.s32.totalorder %s186, 1
                  %s191 = sphi %s162, %s162
                  %s192 = sphi %s159, %s159
                $region58: #{conv_layer_forward.1} parent=54 // loop_header_branch
                  %189 = sbr.rel (%p187) target = $region62
                $region59: #{conv_layer_forward.1} parent=54 // loop_body
                  %v193 = vld [vmem:[%s191] sm:$0xff]
                  %194 = vst [vmem:[%s192] sm:$0xff] %v193
                  %v195 = vld [vmem:[%s191 + $0x10] sm:$0xff]
                  %196 = vst [vmem:[%s192 + $0x8] sm:$0xff] %v195
                $region60: #{conv_layer_forward.1} parent=54 // loop_footer
                  %s190 = sadd.s32 1, %s186
                $region61: #{conv_layer_forward.1} parent=54 // loop_footer_branch
                  %185 = sbr.rel target = $region57
                $region62: #{conv_layer_forward.1} parent=54 // loop_exit
                  _
              $region55: #{conv_layer_forward.1} parent=39 // pred_fallthru
                _
              // Predicated region
              $region63: #{conv_layer_forward.1} parent=39 // pred_check
                _
              $region64: #{conv_layer_forward.1} parent=39 // pred_check_branch
                %198 = sbr.rel target = $region66
              $region65: #{conv_layer_forward.1} parent=39 // pred_region
                _
              $region66: #{conv_layer_forward.1} parent=39 // pred_fallthru
                _
            $region40: #{conv_layer_forward.1} parent=35 // pred_fallthru
              _
            // Predicated region
            $region41: #{conv_layer_forward.1} parent=35 // pred_check
              _
            $region42: #{conv_layer_forward.1} parent=35 // pred_check_branch
              %168 = sbr.rel target = $region44
            $region43: #{conv_layer_forward.1} parent=35 // pred_region
              %s170 = ssub.s32 256, 1
              loop: start=0, step=1, limit=1
              $region45: #{conv_layer_forward.1} parent=43 // loop_pre_header
                _
              $region46: #{conv_layer_forward.1} parent=43 // loop_header
                %s172 = sphi 0, %s176
                %p173 = scmp.ge.s32.totalorder %s172, 1
                %s177 = sphi %s162, %s162
                %s178 = sphi %s159, %s159
              $region47: #{conv_layer_forward.1} parent=43 // loop_header_branch
                %175 = sbr.rel (%p173) target = $region51
              $region48: #{conv_layer_forward.1} parent=43 // loop_body
                %v179 = vld [vmem:[%s177] sm:%s170]
                %180 = vst [vmem:[%s178] sm:%s170] %v179
                %v181 = vld [vmem:[%s177 + $0x10] sm:%s170]
                %182 = vst [vmem:[%s178 + $0x8] sm:%s170] %v181
              $region49: #{conv_layer_forward.1} parent=43 // loop_footer
                %s176 = sadd.s32 1, %s172
              $region50: #{conv_layer_forward.1} parent=43 // loop_footer_branch
                %171 = sbr.rel target = $region46
              $region51: #{conv_layer_forward.1} parent=43 // loop_exit
                _
            $region44: #{conv_layer_forward.1} parent=35 // pred_fallthru
              _
          $region36: #{conv_layer_forward.1} parent=31 // pred_fallthru
            _
          %199 = vnop
        $region32: #{conv_layer_forward.1} parent=27 // pred_fallthru
          _
      $region28: #{conv_layer_forward.1} parent=5 // pred_fallthru
        _
      %p200 = scmp.le.s32.totalorder 1, %s10
      %p201 = scmp.lt.s32.totalorder %s10, 3
      %p202 = pnand %p200, %p201
      %p203 = pneg %p202
      // Predicated region
      $region67: #{conv_layer_forward.1} parent=5 // pred_check
        _
      $region68: #{conv_layer_forward.1} parent=5 // pred_check_branch
        %205 = sbr.rel (%p202) target = $region70
      $region69: #{conv_layer_forward.1} parent=5 // pred_region
        %s206 = ssub.s32 %s10, 1
        %s207 = sand.u32 %s23, 1
        %s208 = sand.u32 %s23, 1
        %s209 = smul.addr %s208, 16
        %s210 = scalar_lea.vmem [#allocation3], %s209
        // Predicated region
        $region71: #{conv_layer_forward.1} parent=69 // pred_check
          %p211 = pneg %p36
        $region72: #{conv_layer_forward.1} parent=69 // pred_check_branch
          %213 = sbr.rel (%p211) target = $region74
        $region73: #{conv_layer_forward.1} parent=69 // pred_region
          _
        $region74: #{conv_layer_forward.1} parent=69 // pred_fallthru
          _
        %s214 = sand.u32 %s23, 1
        %s215 = sand.u32 %s23, 1
        %s216 = smul.addr %s215, 16
        %s217 = scalar_lea.vmem [#allocation3], %s216
        %p218 = pneg %p36
        %p219 = pneg %p33
        %p220 = pneg %p57
        %p221 = pneg %p54
        %p222 = pneg %p78
        %p223 = pneg %p75
        %p224 = pneg %p99
        %p225 = pneg %p96
        %p226 = pneg %p125
        %p227 = pneg %p122
        %s228 = sand.u32 %s112, 1
        %s229 = sand.u32 %s112, 1
        %s230 = smul.addr %s229, 64
        %s231 = scalar_lea.vmem [#allocation4], %s230
        %s232 = smul.u32 2, %s15
        %s233 = smul.u32 2, %s15
        %v235 = vld [vmem:[%s3] sm:$0xf]
        %v236 = vld [vmem:[%s210] sm:$0xff]
        %v237 = vld [vmem:[%s210 + $0x8] sm:$0xff]
        %v238 = vunpack.c.l.bf16 %v236
        %v239 = vunpack.c.h.bf16 %v236
        %v240 = vunpack.c.l.bf16 %v237
        %v241 = vunpack.c.h.bf16 %v237
        %242 = vrot.lane.b32.xlu0 %v238, 17
        %v243 = vpop.permute.xlu0 %242
        %244 = vrot.lane.b32.xlu0 %v240, 17
        %v245 = vpop.permute.xlu0 %244
        %246 = vrot.lane.b32.xlu0 %v239, 17
        %v247 = vpop.permute.xlu0 %246
        %248 = vrot.lane.b32.xlu0 %v241, 17
        %v249 = vpop.permute.xlu0 %248
        %v250 = vlaneseq
        %v251 = vand.u32 %v250, 127
        %vm252 = vcmp.lt.s32.totalorder %v251, 17
        %v253 = vsel %vm252, %v243, %v247
        %v254 = vsel %vm252, %v245, %v249
        %v255 = vsel %vm252, %v247, %v243
        %v256 = vsel %vm252, %v249, %v245
        %v257 = vadd.s32 %v235, 4294967295
        %vm258 = vcmp.ge.s32.totalorder %v257, 0
        %vm259 = vcmp.lt.s32.totalorder %v257, 16
        %vm260 = vmand %vm258, %vm259
        %v261 = vsel %vm258, 1, 0
        %v262 = vrot.slane %v261, 7
        %v263 = vrot.slane %v262, 2
        %vm264 = vcmp.ne.s32.totalorder %v263, 0
        %vm265 = vmand %vm260, %vm264
        %v266 = vsel %vm259, 1, 0
        %v267 = vrot.slane %v266, 7
        %v268 = vrot.slane %v267, 2
        %vm269 = vcmp.ne.s32.totalorder %v268, 0
        %vm270 = vmand %vm265, %vm269
        %v271 = vsel %vm270, 1, 0
        %v272 = vperm.slane %v271, 0
        %v273 = vperm.slane %v271, 2
        %v274 = vperm.slane %v272, 0
        %v275 = vperm.slane %v273, 0
        %vm276 = vcmp.eq.s32.totalorder %v274, 1
        %vm277 = vcmp.eq.s32.totalorder %v275, 1
        %v278 = vsel %vm276, %v255, 0.0
        %v279 = vsel %vm277, %v253, 0.0
        %v280 = vsel %vm276, %v256, 0.0
        %v281 = vsel %vm277, %v254, 0.0
        %v282 = vpack.c.bf16 %v279, %v278
        %v283 = vpack.c.bf16 %v281, %v280
        %284 = vst [vmem:[#allocation2] sm:$0xff] %v282
        %285 = vst [vmem:[#allocation2 + $0x8] sm:$0xff] %v283
        %286 = vrot.lane.b32.xlu0 %v238, 16
        %v287 = vpop.permute.xlu0 %286
        %288 = vrot.lane.b32.xlu0 %v240, 16
        %v289 = vpop.permute.xlu0 %288
        %290 = vrot.lane.b32.xlu0 %v239, 16
        %v291 = vpop.permute.xlu0 %290
        %292 = vrot.lane.b32.xlu0 %v241, 16
        %v293 = vpop.permute.xlu0 %292
        %vm294 = vcmp.lt.s32.totalorder %v251, 16
        %v295 = vsel %vm294, %v287, %v291
        %v296 = vsel %vm294, %v289, %v293
        %v297 = vsel %vm294, %v291, %v287
        %v298 = vsel %vm294, %v293, %v289
        %vm299 = vcmp.ge.s32.totalorder %v235, 0
        %v300 = vsel %vm299, 1, 0
        %v301 = vrot.slane %v300, 7
        %v302 = vrot.slane %v301, 2
        %vm303 = vcmp.ne.s32.totalorder %v302, 0
        %vm304 = vmand %vm260, %vm303
        %vm305 = vcmp.lt.s32.totalorder %v235, 16
        %v306 = vsel %vm305, 1, 0
        %v307 = vrot.slane %v306, 7
        %v308 = vrot.slane %v307, 2
        %vm309 = vcmp.ne.s32.totalorder %v308, 0
        %vm310 = vmand %vm304, %vm309
        %v311 = vsel %vm310, 1, 0
        %v312 = vperm.slane %v311, 0
        %v313 = vperm.slane %v311, 2
        %v314 = vperm.slane %v312, 0
        %v315 = vperm.slane %v313, 0
        %vm316 = vcmp.eq.s32.totalorder %v314, 1
        %vm317 = vcmp.eq.s32.totalorder %v315, 1
        %v318 = vsel %vm316, %v297, 0.0
        %v319 = vsel %vm317, %v295, 0.0
        %v320 = vsel %vm316, %v298, 0.0
        %v321 = vsel %vm317, %v296, 0.0
        %v322 = vpack.c.bf16 %v319, %v318
        %v323 = vpack.c.bf16 %v321, %v320
        %324 = vst [vmem:[#allocation2 + $0x10] sm:$0xff] %v322
        %325 = vst [vmem:[#allocation2 + $0x18] sm:$0xff] %v323
        %326 = vrot.lane.b32.xlu0 %v238, 15
        %v327 = vpop.permute.xlu0 %326
        %328 = vrot.lane.b32.xlu0 %v240, 15
        %v329 = vpop.permute.xlu0 %328
        %330 = vrot.lane.b32.xlu0 %v239, 15
        %v331 = vpop.permute.xlu0 %330
        %332 = vrot.lane.b32.xlu0 %v241, 15
        %v333 = vpop.permute.xlu0 %332
        %vm334 = vcmp.lt.s32.totalorder %v251, 15
        %v335 = vsel %vm334, %v327, %v331
        %v336 = vsel %vm334, %v329, %v333
        %v337 = vsel %vm334, %v331, %v327
        %v338 = vsel %vm334, %v333, %v329
        %v339 = vadd.s32 %v235, 1
        %vm340 = vcmp.ge.s32.totalorder %v339, 0
        %v341 = vsel %vm340, 1, 0
        %v342 = vrot.slane %v341, 7
        %v343 = vrot.slane %v342, 2
        %vm344 = vcmp.ne.s32.totalorder %v343, 0
        %vm345 = vmand %vm260, %vm344
        %vm346 = vcmp.lt.s32.totalorder %v339, 16
        %v347 = vsel %vm346, 1, 0
        %v348 = vrot.slane %v347, 7
        %v349 = vrot.slane %v348, 2
        %vm350 = vcmp.ne.s32.totalorder %v349, 0
        %vm351 = vmand %vm345, %vm350
        %v352 = vsel %vm351, 1, 0
        %v353 = vperm.slane %v352, 0
        %v354 = vperm.slane %v352, 2
        %v355 = vperm.slane %v353, 0
        %v356 = vperm.slane %v354, 0
        %vm357 = vcmp.eq.s32.totalorder %v355, 1
        %vm358 = vcmp.eq.s32.totalorder %v356, 1
        %v359 = vsel %vm357, %v337, 0.0
        %v360 = vsel %vm358, %v335, 0.0
        %v361 = vsel %vm357, %v338, 0.0
        %v362 = vsel %vm358, %v336, 0.0
        %v363 = vpack.c.bf16 %v360, %v359
        %v364 = vpack.c.bf16 %v362, %v361
        %365 = vst [vmem:[#allocation2 + $0x20] sm:$0xff] %v363
        %366 = vst [vmem:[#allocation2 + $0x28] sm:$0xff] %v364
        %367 = vrot.lane.b32.xlu0 %v238, 1
        %v368 = vpop.permute.xlu0 %367
        %369 = vrot.lane.b32.xlu0 %v240, 1
        %v370 = vpop.permute.xlu0 %369
        %371 = vrot.lane.b32.xlu0 %v239, 1
        %v372 = vpop.permute.xlu0 %371
        %373 = vrot.lane.b32.xlu0 %v241, 1
        %v374 = vpop.permute.xlu0 %373
        %vm375 = vcmp.lt.s32.totalorder %v251, 1
        %v376 = vsel %vm375, %v368, %v372
        %v377 = vsel %vm375, %v370, %v374
        %v378 = vsel %vm375, %v372, %v368
        %v379 = vsel %vm375, %v374, %v370
        %vm380 = vmand %vm299, %vm305
        %vm381 = vmand %vm380, %vm264
        %vm382 = vmand %vm381, %vm269
        %v383 = vsel %vm382, 1, 0
        %v384 = vperm.slane %v383, 0
        %v385 = vperm.slane %v383, 2
        %v386 = vperm.slane %v384, 0
        %v387 = vperm.slane %v385, 0
        %vm388 = vcmp.eq.s32.totalorder %v386, 1
        %vm389 = vcmp.eq.s32.totalorder %v387, 1
        %v390 = vsel %vm388, %v378, 0.0
        %v391 = vsel %vm389, %v376, 0.0
        %v392 = vsel %vm388, %v379, 0.0
        %v393 = vsel %vm389, %v377, 0.0
        %v394 = vpack.c.bf16 %v391, %v390
        %v395 = vpack.c.bf16 %v393, %v392
        %396 = vst [vmem:[#allocation2 + $0x30] sm:$0xff] %v394
        %397 = vst [vmem:[#allocation2 + $0x38] sm:$0xff] %v395
        %398 = vst [vmem:[#allocation2 + $0x40] sm:$0xff] %v236
        %399 = vst [vmem:[#allocation2 + $0x48] sm:$0xff] %v237
        %400 = vrot.lane.b32.xlu0 %v238, 127
        %v401 = vpop.permute.xlu0 %400
        %402 = vrot.lane.b32.xlu0 %v240, 127
        %v403 = vpop.permute.xlu0 %402
        %404 = vrot.lane.b32.xlu0 %v239, 127
        %v405 = vpop.permute.xlu0 %404
        %406 = vrot.lane.b32.xlu0 %v241, 127
        %v407 = vpop.permute.xlu0 %406
        %vm408 = vcmp.lt.s32.totalorder %v251, 127
        %v409 = vsel %vm408, %v401, %v405
        %v410 = vsel %vm408, %v403, %v407
        %v411 = vsel %vm408, %v405, %v401
        %v412 = vsel %vm408, %v407, %v403
        %vm413 = vmand %vm380, %vm344
        %vm414 = vmand %vm413, %vm350
        %v415 = vsel %vm414, 1, 0
        %v416 = vperm.slane %v415, 0
        %v417 = vperm.slane %v415, 2
        %v418 = vperm.slane %v416, 0
        %v419 = vperm.slane %v417, 0
        %vm420 = vcmp.eq.s32.totalorder %v418, 1
        %vm421 = vcmp.eq.s32.totalorder %v419, 1
        %v422 = vsel %vm420, %v409, 0.0
        %v423 = vsel %vm421, %v411, 0.0
        %v424 = vsel %vm420, %v410, 0.0
        %v425 = vsel %vm421, %v412, 0.0
        %v426 = vpack.c.bf16 %v423, %v422
        %v427 = vpack.c.bf16 %v425, %v424
        %428 = vst [vmem:[#allocation2 + $0x50] sm:$0xff] %v426
        %429 = vst [vmem:[#allocation2 + $0x58] sm:$0xff] %v427
        %430 = vrot.lane.b32.xlu0 %v238, 113
        %v431 = vpop.permute.xlu0 %430
        %432 = vrot.lane.b32.xlu0 %v240, 113
        %v433 = vpop.permute.xlu0 %432
        %434 = vrot.lane.b32.xlu0 %v239, 113
        %v435 = vpop.permute.xlu0 %434
        %436 = vrot.lane.b32.xlu0 %v241, 113
        %v437 = vpop.permute.xlu0 %436
        %vm438 = vcmp.lt.s32.totalorder %v251, 113
        %v439 = vsel %vm438, %v431, %v435
        %v440 = vsel %vm438, %v433, %v437
        %v441 = vsel %vm438, %v435, %v431
        %v442 = vsel %vm438, %v437, %v433
        %vm443 = vmand %vm340, %vm346
        %vm444 = vmand %vm443, %vm264
        %vm445 = vmand %vm444, %vm269
        %v446 = vsel %vm445, 1, 0
        %v447 = vperm.slane %v446, 0
        %v448 = vperm.slane %v446, 2
        %v449 = vperm.slane %v447, 0
        %v450 = vperm.slane %v448, 0
        %vm451 = vcmp.eq.s32.totalorder %v449, 1
        %vm452 = vcmp.eq.s32.totalorder %v450, 1
        %v453 = vsel %vm451, %v439, 0.0
        %v454 = vsel %vm452, %v441, 0.0
        %v455 = vsel %vm451, %v440, 0.0
        %v456 = vsel %vm452, %v442, 0.0
        %v457 = vpack.c.bf16 %v454, %v453
        %v458 = vpack.c.bf16 %v456, %v455
        %459 = vst [vmem:[#allocation2 + $0x60] sm:$0xff] %v457
        %460 = vst [vmem:[#allocation2 + $0x68] sm:$0xff] %v458
        %461 = vrot.lane.b32.xlu0 %v238, 112
        %v462 = vpop.permute.xlu0 %461
        %463 = vrot.lane.b32.xlu0 %v240, 112
        %v464 = vpop.permute.xlu0 %463
        %465 = vrot.lane.b32.xlu0 %v239, 112
        %v466 = vpop.permute.xlu0 %465
        %467 = vrot.lane.b32.xlu0 %v241, 112
        %v468 = vpop.permute.xlu0 %467
        %vm469 = vcmp.lt.s32.totalorder %v251, 112
        %v470 = vsel %vm469, %v462, %v466
        %v471 = vsel %vm469, %v464, %v468
        %v472 = vsel %vm469, %v466, %v462
        %v473 = vsel %vm469, %v468, %v464
        %vm474 = vmand %vm443, %vm303
        %vm475 = vmand %vm474, %vm309
        %v476 = vsel %vm475, 1, 0
        %v477 = vperm.slane %v476, 0
        %v478 = vperm.slane %v476, 2
        %v479 = vperm.slane %v477, 0
        %v480 = vperm.slane %v478, 0
        %vm481 = vcmp.eq.s32.totalorder %v479, 1
        %vm482 = vcmp.eq.s32.totalorder %v480, 1
        %v483 = vsel %vm481, %v470, 0.0
        %v484 = vsel %vm482, %v472, 0.0
        %v485 = vsel %vm481, %v471, 0.0
        %v486 = vsel %vm482, %v473, 0.0
        %v487 = vpack.c.bf16 %v484, %v483
        %v488 = vpack.c.bf16 %v486, %v485
        %489 = vst [vmem:[#allocation2 + $0x70] sm:$0xff] %v487
        %490 = vst [vmem:[#allocation2 + $0x78] sm:$0xff] %v488
        %491 = vrot.lane.b32.xlu0 %v238, 111
        %v492 = vpop.permute.xlu0 %491
        %493 = vrot.lane.b32.xlu0 %v240, 111
        %v494 = vpop.permute.xlu0 %493
        %495 = vrot.lane.b32.xlu0 %v239, 111
        %v496 = vpop.permute.xlu0 %495
        %497 = vrot.lane.b32.xlu0 %v241, 111
        %v498 = vpop.permute.xlu0 %497
        %vm499 = vcmp.lt.s32.totalorder %v251, 111
        %v500 = vsel %vm499, %v492, %v496
        %v501 = vsel %vm499, %v494, %v498
        %v502 = vsel %vm499, %v496, %v492
        %v503 = vsel %vm499, %v498, %v494
        %vm504 = vmand %vm443, %vm344
        %vm505 = vmand %vm504, %vm350
        %v506 = vsel %vm505, 1, 0
        %v507 = vperm.slane %v506, 0
        %v508 = vperm.slane %v506, 2
        %v509 = vperm.slane %v507, 0
        %v510 = vperm.slane %v508, 0
        %vm511 = vcmp.eq.s32.totalorder %v509, 1
        %vm512 = vcmp.eq.s32.totalorder %v510, 1
        %v513 = vsel %vm511, %v500, 0.0
        %v514 = vsel %vm512, %v502, 0.0
        %v515 = vsel %vm511, %v501, 0.0
        %v516 = vsel %vm512, %v503, 0.0
        %v517 = vpack.c.bf16 %v514, %v513
        %v518 = vpack.c.bf16 %v516, %v515
        %519 = vst [vmem:[#allocation2 + $0x80] sm:$0xff] %v517
        %520 = vst [vmem:[#allocation2 + $0x88] sm:$0xff] %v518
        %v521 = vld [vmem:[%s1] sm:$0xff]
        %v522 = vld [vmem:[%s1 + $0x8] sm:$0xff]
        %v523 = vld [vmem:[%s1 + $0x10] sm:$0xff]
        %v524 = vld [vmem:[%s1 + $0x18] sm:$0xff]
        %v525 = vld [vmem:[#allocation2] sm:$0xff]
        %v526 = vld [vmem:[#allocation2 + $0x8] sm:$0xff]
        %v527 = vld [vmem:[#allocation2 + $0x10] sm:$0xff]
        %v528 = vld [vmem:[#allocation2 + $0x18] sm:$0xff]
        %v529 = vld [vmem:[#allocation2 + $0x20] sm:$0xff]
        %v530 = vld [vmem:[#allocation2 + $0x28] sm:$0xff]
        %v531 = vld [vmem:[#allocation2 + $0x30] sm:$0xff]
        %v532 = vld [vmem:[#allocation2 + $0x38] sm:$0xff]
        %v533 = vld [vmem:[#allocation2 + $0x40] sm:$0xff]
        %v534 = vld [vmem:[#allocation2 + $0x48] sm:$0xff]
        %v535 = vld [vmem:[#allocation2 + $0x50] sm:$0xff]
        %v536 = vld [vmem:[#allocation2 + $0x58] sm:$0xff]
        %v537 = vld [vmem:[#allocation2 + $0x60] sm:$0xff]
        %v538 = vld [vmem:[#allocation2 + $0x68] sm:$0xff]
        %v539 = vld [vmem:[#allocation2 + $0x70] sm:$0xff]
        %v540 = vld [vmem:[#allocation2 + $0x78] sm:$0xff]
        %v541 = vld [vmem:[#allocation2 + $0x80] sm:$0xff]
        %v542 = vld [vmem:[#allocation2 + $0x88] sm:$0xff]
        %v543 = vld [vmem:[%s2] sm:$0xff]
        %v544 = vld [vmem:[%s2 + $0x8] sm:$0xff]
        %v545 = vld [vmem:[%s2 + $0x10] sm:$0xff]
        %v546 = vld [vmem:[%s2 + $0x18] sm:$0xff]
        %548 = vset.pattern.permute.xlu0 0
        %549 = vperm.xlu0 %548, %v543
        %v550 = vpop.permute.xlu0 %549
        %553 = vset.pattern.permute.xlu0 0
        %554 = vperm.xlu0 %553, %v544
        %v555 = vpop.permute.xlu0 %554
        %558 = vset.pattern.permute.xlu0 0
        %559 = vperm.xlu0 %558, %v545
        %v560 = vpop.permute.xlu0 %559
        %563 = vset.pattern.permute.xlu0 0
        %564 = vperm.xlu0 %563, %v546
        %v565 = vpop.permute.xlu0 %564
        %v571 = vunpack.c.l.b16 %v521
        %v572 = vunpack.c.h.b16 %v521
        %v573 = vunpack.c.l.b16 %v522
        %v574 = vunpack.c.h.b16 %v522
        %v575 = vunpack.c.l.b16 %v523
        %v576 = vunpack.c.h.b16 %v523
        %v577 = vunpack.c.l.b16 %v524
        %v578 = vunpack.c.h.b16 %v524
        %v579 = vpack.c.b16 %v573, %v571
        %v580 = vpack.c.b16 %v574, %v572
        %v581 = vpack.c.b16 %v577, %v575
        %v582 = vpack.c.b16 %v578, %v576
        %v603 = vunpack.c.l.b16 %v525
        %v604 = vunpack.c.h.b16 %v525
        %v605 = vunpack.c.l.b16 %v526
        %v606 = vunpack.c.h.b16 %v526
        %v607 = vunpack.c.l.b16 %v527
        %v608 = vunpack.c.h.b16 %v527
        %v609 = vunpack.c.l.b16 %v528
        %v610 = vunpack.c.h.b16 %v528
        %v611 = vunpack.c.l.b16 %v529
        %v612 = vunpack.c.h.b16 %v529
        %v613 = vunpack.c.l.b16 %v530
        %v614 = vunpack.c.h.b16 %v530
        %v615 = vunpack.c.l.b16 %v531
        %v616 = vunpack.c.h.b16 %v531
        %v617 = vunpack.c.l.b16 %v532
        %v618 = vunpack.c.h.b16 %v532
        %v619 = vunpack.c.l.b16 %v533
        %v620 = vunpack.c.h.b16 %v533
        %v621 = vunpack.c.l.b16 %v534
        %v622 = vunpack.c.h.b16 %v534
        %v623 = vunpack.c.l.b16 %v535
        %v624 = vunpack.c.h.b16 %v535
        %v625 = vunpack.c.l.b16 %v536
        %v626 = vunpack.c.h.b16 %v536
        %v627 = vunpack.c.l.b16 %v537
        %v628 = vunpack.c.h.b16 %v537
        %v629 = vunpack.c.l.b16 %v538
        %v630 = vunpack.c.h.b16 %v538
        %v631 = vunpack.c.l.b16 %v539
        %v632 = vunpack.c.h.b16 %v539
        %v633 = vunpack.c.l.b16 %v540
        %v634 = vunpack.c.h.b16 %v540
        %v635 = vunpack.c.l.b16 %v541
        %v636 = vunpack.c.h.b16 %v541
        %v637 = vunpack.c.l.b16 %v542
        %v638 = vunpack.c.h.b16 %v542
        %v639 = vpack.c.b16 %v605, %v603
        %v640 = vpack.c.b16 %v606, %v604
        %v641 = vpack.c.b16 %v609, %v607
        %v642 = vpack.c.b16 %v610, %v608
        %v643 = vpack.c.b16 %v613, %v611
        %v644 = vpack.c.b16 %v614, %v612
        %v645 = vpack.c.b16 %v617, %v615
        %v646 = vpack.c.b16 %v618, %v616
        %v647 = vpack.c.b16 %v621, %v619
        %v648 = vpack.c.b16 %v622, %v620
        %v649 = vpack.c.b16 %v625, %v623
        %v650 = vpack.c.b16 %v626, %v624
        %v651 = vpack.c.b16 %v629, %v627
        %v652 = vpack.c.b16 %v630, %v628
        %v653 = vpack.c.b16 %v633, %v631
        %v654 = vpack.c.b16 %v634, %v632
        %v655 = vpack.c.b16 %v637, %v635
        %v656 = vpack.c.b16 %v638, %v636
        %vm675 = vcmask 130048
        %v677 = vsel %vm675, %v580, 0
        %v680 = vsel %vm675, %v582, 0
        %682 = vmatpush.bf16.msra.mxu0 %v653
        %683 = vmatpush.bf16.msra.mxu0 %v651
        %684 = vmatpush.bf16.msra.mxu0 %v649
        %685 = vmatpush.bf16.msra.mxu0 %v647
        %686 = vmatpush.bf16.msra.mxu0 %v645
        %687 = vmatpush.bf16.msra.mxu0 %v643
        %688 = vmatpush.bf16.msra.mxu0 %v641
        %689 = vmatpush.bf16.msra.mxu0 %v639
        %690 = vmatmul.bf16.gmra.mxu0 %v579
        %v691 = vpop.f32.mrf.mxu0
        %v692 = vadd.f32 %v550, %v691
        %v693 = vpop.f32.mrf.mxu0
        %v694 = vadd.f32 %v555, %v693
        %695 = vmatmul.bf16.gmra.mxu0 %v581
        %v696 = vpop.f32.mrf.mxu0
        %v697 = vadd.f32 %v560, %v696
        %v698 = vpop.f32.mrf.mxu0
        %v699 = vadd.f32 %v565, %v698
        %700 = vdwg.mxu0
        %701 = vmatpush.bf16.msra.mxu0 0
        %702 = vmatpush.bf16.msra.mxu0 0
        %703 = vmatpush.bf16.msra.mxu0 0
        %704 = vmatpush.bf16.msra.mxu0 0
        %705 = vmatpush.bf16.msra.mxu0 0
        %706 = vmatpush.bf16.msra.mxu0 0
        %707 = vmatpush.bf16.msra.mxu0 0
        %708 = vmatpush.bf16.msra.mxu0 %v655
        %709 = vmatmul.bf16.gmra.mxu0 %v677
        %v710 = vpop.f32.mrf.mxu0
        %v711 = vadd.f32 %v692, %v710
        %v712 = vpop.f32.mrf.mxu0
        %v713 = vadd.f32 %v694, %v712
        %714 = vmatmul.bf16.gmra.mxu0 %v680
        %v715 = vpop.f32.mrf.mxu0
        %v716 = vadd.f32 %v697, %v715
        %v717 = vpop.f32.mrf.mxu0
        %v718 = vadd.f32 %v699, %v717
        %719 = vdwg.mxu0
        %720 = vmatpush.bf16.msra.mxu0 %v654
        %721 = vmatpush.bf16.msra.mxu0 %v652
        %722 = vmatpush.bf16.msra.mxu0 %v650
        %723 = vmatpush.bf16.msra.mxu0 %v648
        %724 = vmatpush.bf16.msra.mxu0 %v646
        %725 = vmatpush.bf16.msra.mxu0 %v644
        %726 = vmatpush.bf16.msra.mxu0 %v642
        %727 = vmatpush.bf16.msra.mxu0 %v640
        %728 = vmatmul.bf16.gmra.mxu0 %v579
        %v729 = vpop.f32.mrf.mxu0
        %v730 = vadd.f32 %v550, %v729
        %v731 = vpop.f32.mrf.mxu0
        %v732 = vadd.f32 %v555, %v731
        %733 = vmatmul.bf16.gmra.mxu0 %v581
        %v734 = vpop.f32.mrf.mxu0
        %v735 = vadd.f32 %v560, %v734
        %v736 = vpop.f32.mrf.mxu0
        %v737 = vadd.f32 %v565, %v736
        %738 = vdwg.mxu0
        %739 = vmatpush.bf16.msra.mxu0 0
        %740 = vmatpush.bf16.msra.mxu0 0
        %741 = vmatpush.bf16.msra.mxu0 0
        %742 = vmatpush.bf16.msra.mxu0 0
        %743 = vmatpush.bf16.msra.mxu0 0
        %744 = vmatpush.bf16.msra.mxu0 0
        %745 = vmatpush.bf16.msra.mxu0 0
        %746 = vmatpush.bf16.msra.mxu0 %v656
        %747 = vmatmul.bf16.gmra.mxu0 %v677
        %v748 = vpop.f32.mrf.mxu0
        %v749 = vadd.f32 %v730, %v748
        %v750 = vpop.f32.mrf.mxu0
        %v751 = vadd.f32 %v732, %v750
        %752 = vmatmul.bf16.gmra.mxu0 %v680
        %v753 = vpop.f32.mrf.mxu0
        %v754 = vadd.f32 %v735, %v753
        %v755 = vpop.f32.mrf.mxu0
        %v756 = vadd.f32 %v737, %v755
        %757 = vdwg.mxu0
        %vm758 = vcmp.gt.f32.partialorder %v711, 0.0
        %vm759 = vcmp.gt.f32.partialorder %v749, 0.0
        %vm760 = vcmp.gt.f32.partialorder %v713, 0.0
        %vm761 = vcmp.gt.f32.partialorder %v751, 0.0
        %vm762 = vcmp.gt.f32.partialorder %v716, 0.0
        %vm763 = vcmp.gt.f32.partialorder %v754, 0.0
        %vm764 = vcmp.gt.f32.partialorder %v718, 0.0
        %vm765 = vcmp.gt.f32.partialorder %v756, 0.0
        %v766 = vmul.f32 %v711, 0.1
        %v767 = vmul.f32 %v749, 0.1
        %v768 = vmul.f32 %v713, 0.1
        %v769 = vmul.f32 %v751, 0.1
        %v770 = vmul.f32 %v716, 0.1
        %v771 = vmul.f32 %v754, 0.1
        %v772 = vmul.f32 %v718, 0.1
        %v773 = vmul.f32 %v756, 0.1
        %v774 = vsel %vm758, %v711, %v766
        %v775 = vsel %vm759, %v749, %v767
        %v776 = vsel %vm760, %v713, %v768
        %v777 = vsel %vm761, %v751, %v769
        %v778 = vsel %vm762, %v716, %v770
        %v779 = vsel %vm763, %v754, %v771
        %v780 = vsel %vm764, %v718, %v772
        %v781 = vsel %vm765, %v756, %v773
        %782 = vst [vmem:[%s231] sm:$0xff] %v774
        %783 = vst [vmem:[%s231 + $0x8] sm:$0xff] %v775
        %784 = vst [vmem:[%s231 + $0x10] sm:$0xff] %v776
        %785 = vst [vmem:[%s231 + $0x18] sm:$0xff] %v777
        %786 = vst [vmem:[%s231 + $0x20] sm:$0xff] %v778
        %787 = vst [vmem:[%s231 + $0x28] sm:$0xff] %v779
        %788 = vst [vmem:[%s231 + $0x30] sm:$0xff] %v780
        %789 = vst [vmem:[%s231 + $0x38] sm:$0xff] %v781
        %s790 = sand.u32 %s112, 1
        %s791 = sand.u32 %s112, 1
        %s792 = smul.addr %s791, 64
        %s793 = scalar_lea.vmem [#allocation4], %s792
        // Predicated region
        $region75: #{conv_layer_forward.1} parent=69 // pred_check
          %p794 = pneg %p122
        $region76: #{conv_layer_forward.1} parent=69 // pred_check_branch
          %796 = sbr.rel (%p794) target = $region78
        $region77: #{conv_layer_forward.1} parent=69 // pred_region
          %s797 = smul.u32 2, %s15
          %s798 = smul.addr %s797, 8
          %s799 = scalar_lea.vmem %s4, %s798
          // Predicated region
          $region79: #{conv_layer_forward.1} parent=77 // pred_check
            _
          $region80: #{conv_layer_forward.1} parent=77 // pred_check_branch
            %801 = sbr.rel (0) target = $region82
          $region81: #{conv_layer_forward.1} parent=77 // pred_region
            // Predicated region
            $region83: #{conv_layer_forward.1} parent=81 // pred_check
              _
            $region84: #{conv_layer_forward.1} parent=81 // pred_check_branch
              %803 = sbr.rel (0) target = $region86
            $region85: #{conv_layer_forward.1} parent=81 // pred_region
              loop: start=0, step=1, limit=1
              $region87: #{conv_layer_forward.1} parent=85 // loop_pre_header
                _
              $region88: #{conv_layer_forward.1} parent=85 // loop_header
                %s805 = sphi 0, %s809
                %p806 = scmp.ge.s32.totalorder %s805, 1
                %s810 = sphi %s793, %s793
                %s811 = sphi %s799, %s799
              $region89: #{conv_layer_forward.1} parent=85 // loop_header_branch
                %808 = sbr.rel (%p806) target = $region93
              $region90: #{conv_layer_forward.1} parent=85 // loop_body
                %v812 = vld [vmem:[%s810] sm:$0xff]
                %813 = vst [vmem:[%s811] sm:$0xff] %v812
                %v814 = vld [vmem:[%s810 + $0x8] sm:$0xff]
                %815 = vst [vmem:[%s811 + $0x8] sm:$0xff] %v814
                %v816 = vld [vmem:[%s810 + $0x10] sm:$0xff]
                %817 = vst [vmem:[%s811 + $0x20] sm:$0xff] %v816
                %v818 = vld [vmem:[%s810 + $0x18] sm:$0xff]
                %819 = vst [vmem:[%s811 + $0x28] sm:$0xff] %v818
                %v820 = vld [vmem:[%s810 + $0x20] sm:$0xff]
                %821 = vst [vmem:[%s811 + $0x40] sm:$0xff] %v820
                %v822 = vld [vmem:[%s810 + $0x28] sm:$0xff]
                %823 = vst [vmem:[%s811 + $0x48] sm:$0xff] %v822
                %v824 = vld [vmem:[%s810 + $0x30] sm:$0xff]
                %825 = vst [vmem:[%s811 + $0x60] sm:$0xff] %v824
                %v826 = vld [vmem:[%s810 + $0x38] sm:$0xff]
                %827 = vst [vmem:[%s811 + $0x68] sm:$0xff] %v826
              $region91: #{conv_layer_forward.1} parent=85 // loop_footer
                %s809 = sadd.s32 1, %s805
              $region92: #{conv_layer_forward.1} parent=85 // loop_footer_branch
                %804 = sbr.rel target = $region88
              $region93: #{conv_layer_forward.1} parent=85 // loop_exit
                _
            $region86: #{conv_layer_forward.1} parent=81 // pred_fallthru
              _
            // Predicated region
            $region94: #{conv_layer_forward.1} parent=81 // pred_check
              _
            $region95: #{conv_layer_forward.1} parent=81 // pred_check_branch
              %829 = sbr.rel target = $region97
            $region96: #{conv_layer_forward.1} parent=81 // pred_region
              _
            $region97: #{conv_layer_forward.1} parent=81 // pred_fallthru
              _
          $region82: #{conv_layer_forward.1} parent=77 // pred_fallthru
            _
          %830 = vnop
        $region78: #{conv_layer_forward.1} parent=69 // pred_fallthru
          _
      $region70: #{conv_layer_forward.1} parent=5 // pred_fallthru
        _
      %p831 = scmp.le.s32.totalorder 2, %s10
      // Predicated region
      $region98: #{conv_layer_forward.1} parent=5 // pred_check
        %p832 = pneg %p831
      $region99: #{conv_layer_forward.1} parent=5 // pred_check_branch
        %834 = sbr.rel (%p832) target = $region101
      $region100: #{conv_layer_forward.1} parent=5 // pred_region
        %s835 = ssub.s32 %s10, 2
        // Predicated region
        $region102: #{conv_layer_forward.1} parent=100 // pred_check
          %p836 = pneg %p128
        $region103: #{conv_layer_forward.1} parent=100 // pred_check_branch
          %838 = sbr.rel (%p836) target = $region105
        $region104: #{conv_layer_forward.1} parent=100 // pred_region
          %s839 = sand.u32 %s113, 1
          %s840 = sand.u32 %s113, 1
          %s841 = smul.addr %s840, 64
          %s842 = scalar_lea.vmem [#allocation4], %s841
        $region105: #{conv_layer_forward.1} parent=100 // pred_fallthru
          _
      $region101: #{conv_layer_forward.1} parent=5 // pred_fallthru
        _
    $region6: #{conv_layer_forward.1} parent=1 // loop_footer
      %s14 = sadd.s32 1, %s10
    $region7: #{conv_layer_forward.1} parent=1 // loop_footer_branch
      %9 = sbr.rel target = $region3
    $region8: #{conv_layer_forward.1} parent=1 // loop_exit
      _

</llo_original>
